<compile_context>
chip_gen: v7x
topology: tpu7x:2x2x1
jax: 0.10.0
libtpu: 0.0.40
codegen_flags: <defaults>
</compile_context>

<pallas_src>
import functools

import jax
import jax.numpy as jnp
from jax import lax
from jax.experimental import pallas as pl
from jax.experimental.pallas import tpu as pltpu


def _tpu_params():
    """Generation-aware VMEM limit, tile byte budget, TensorCore count."""
    kind = ""
    try:
        kind = jax.devices()[0].device_kind.lower()
    except Exception:
        pass

    vmem_cap = None
    try:
        vmem_cap = int(pltpu.get_tpu_info().vmem_capacity_bytes)
    except Exception:
        vmem_cap = None
    if vmem_cap is None:
        # v4 / v5p / v5e / v6e have 128 MiB of VMEM; anything unknown (incl.
        # v7x) is treated conservatively as a 64 MiB chip.
        big = any(t in kind for t in ("v4", "v5", "v6"))
        vmem_cap = (128 if big else 64) * 1024 * 1024

    if vmem_cap >= 96 * 1024 * 1024:
        # v5e / v6e class: lots of VMEM, single TensorCore -> big tiles,
        # no parallel split (a split only wastes bandwidth on duplicates).
        return {
            "vmem_limit": 96 * 1024 * 1024,
            "tile_budget": 16 * 1024 * 1024,
            "num_tc": 1,
        }
    # v7x class: 64 MiB physical VMEM per TC, 2 TCs sharing HBM.
    return {
        "vmem_limit": 48 * 1024 * 1024,
        "tile_budget": 8 * 1024 * 1024,
        "num_tc": 2,
    }


def _pick_tile_n(n, c, itemsize, tile_budget_bytes):
    """Rows per tile from a byte budget that covers the prob tile plus the
    (tile_n, 1) int32 target and f32 reward side inputs (8 bytes/row).
    Rounded to a multiple of 32 for clean sublane packing of any dtype."""
    per_row = c * itemsize + 8
    rows = tile_budget_bytes // max(1, per_row)
    rows = max(32, (rows // 32) * 32)
    n_ceil = ((n + 31) // 32) * 32
    return max(32, min(rows, n_ceil))


def _ganloss_kernel(prob_ref, tgt_ref, rew_ref, out_ref, acc_ref, *,
                    n_true, tile_n, inner):
    p = pl.program_id(0)   # parallel split (one per TensorCore on v7x)
    i = pl.program_id(1)   # reduction step within the split

    @pl.when(i == 0)
    def _():
        acc_ref[...] = jnp.zeros_like(acc_ref)

    prob = prob_ref[...]                       # (tile_n, C), native dtype
    tgt = tgt_ref[...]                         # (tile_n, 1) i32
    rew = rew_ref[...]                         # (tile_n, 1) f32

    tn, c = prob.shape

    # one_hot.scatter_(1, target, 1)  ->  class-index iota compare; select in
    # the native dtype (bf16 stays packed on the VPU).  The lane reduction is
    # exact: each row has at most one non-zero element.
    col_ids = lax.broadcasted_iota(jnp.int32, (tn, c), 1)
    zero = jnp.zeros((), prob.dtype)
    sel = jnp.where(col_ids == tgt, prob, zero)                     # (tn, C)
    row = jnp.sum(sel, axis=-1, keepdims=True).astype(jnp.float32)  # (tn, 1)

    # Mask rows outside the true N (partial last tile and clamped duplicate
    # tiles).  Kept as a jnp.where select so NaN/Inf garbage in padded rows
    # never propagates into the accumulator.
    row0 = (p * inner + i) * tile_n
    row_ids = row0 + lax.broadcasted_iota(jnp.int32, (tn, 1), 0)
    contrib = jnp.where(row_ids < n_true, row * rew, 0.0)           # (tn, 1)

    acc_ref[...] = acc_ref[...] + jnp.sum(contrib)

    @pl.when(i == inner - 1)
    def _():
        out_ref[...] = jnp.broadcast_to(acc_ref[...], out_ref.shape)


def gan_loss(prob, target, reward, *, tile_n=None, num_splits=None):
    """prob: (N, C), target: (N,) int, reward: (N,) -> scalar f32 loss."""
    n, c = prob.shape
    if n == 0:
        # Guard: empty batch (PyTorch would produce 0/0 here).
        return jnp.zeros((), jnp.float32)

    params = _tpu_params()

    if tile_n is None:
        tile_n = _pick_tile_n(n, c, prob.dtype.itemsize, params["tile_budget"])
    tile_n = max(32, (int(tile_n) // 32) * 32)

    num_tiles = pl.cdiv(n, tile_n)
    if num_splits is None:
        # Multi-way split only on multi-TensorCore chips (v7x-class); a split
        # on a 1-TC chip just re-fetches fully-masked duplicate tiles.
        num_splits = params["num_tc"] if num_tiles >= 2 else 1
    num_splits = max(1, min(int(num_splits), num_tiles))
    inner = pl.cdiv(num_tiles, num_splits)

    target_2d = target.reshape(n, 1).astype(jnp.int32)
    reward_2d = reward.reshape(n, 1).astype(jnp.float32)

    def tile_map(pi, ii):
        # Clamp so trailing duplicate tiles stay in-bounds; they are zeroed
        # out by the in-kernel row mask (which uses the *unclamped* index).
        t = jnp.minimum(pi * inner + ii, num_tiles - 1)
        return (t, 0)

    kernel = functools.partial(
        _ganloss_kernel, n_true=n, tile_n=tile_n, inner=inner)

    partials = pl.pallas_call(
        kernel,
        out_shape=jax.ShapeDtypeStruct((num_splits, 8, 128), jnp.float32),
        grid=(num_splits, inner),
        in_specs=[
            pl.BlockSpec((tile_n, c), tile_map),   # prob (native dtype)
            pl.BlockSpec((tile_n, 1), tile_map),   # target
            pl.BlockSpec((tile_n, 1), tile_map),   # reward
        ],
        out_specs=pl.BlockSpec((1, 8, 128), lambda pi, ii: (pi, 0, 0)),
        scratch_shapes=[pltpu.VMEM((1, 1), jnp.float32)],
        compiler_params=pltpu.CompilerParams(
            dimension_semantics=("parallel", "arbitrary"),
            vmem_limit_bytes=params["vmem_limit"],
        ),
    )(prob, target_2d, reward_2d)

    # Finalize with the TRUE global N (not tile / padded size).
    return -jnp.sum(partials[:, 0, 0]) / jnp.float32(n)


if __name__ == "__main__":
    key = jax.random.PRNGKey(0)
    k1, k2, k3 = jax.random.split(key, 3)

    # Small shapes consistent with the module: prob (N, C), target (N,),
    # reward (N,).  N=90 with tile_n=32, num_splits=2 exercises the 2-way
    # split, multi-tile accumulation, a partial last tile and a fully-masked
    # clamped duplicate tile; the auto path exercises generation-aware sizing.
    N, C = 90, 32

    logits = jax.random.normal(k1, (N, C), dtype=jnp.float32)
    prob = jax.nn.log_softmax(logits, axis=-1)   # generator log-probs
    target = jax.random.randint(k2, (N,), 0, C, dtype=jnp.int32)
    reward = jax.random.uniform(k3, (N,), dtype=jnp.float32)

    # plain-JAX reference
    ref = -jnp.sum(prob[jnp.arange(N), target] * reward) / N

    loss_tiled = gan_loss(prob, target, reward, tile_n=32, num_splits=2)
    loss_auto = gan_loss(prob, target, reward)
    jax.block_until_ready((loss_tiled, loss_auto))

    assert jnp.allclose(loss_tiled, ref, atol=1e-5, rtol=1e-5), (loss_tiled, ref)
    assert jnp.allclose(loss_auto, ref, atol=1e-5, rtol=1e-5), (loss_auto, ref)

    print("KERNEL_OK")
</pallas_src>

<mosaic_0001>
module attributes {stable_mosaic.version = 11 : i64} {
  func.func @_ganloss_kernel(%arg0: i32, %arg1: i32, %arg2: memref<32x32xf32, #tpu.memory_space<vmem>>, %arg3: memref<32x1xi32, #tpu.memory_space<vmem>>, %arg4: memref<32x1xf32, #tpu.memory_space<vmem>>, %arg5: memref<1x8x128xf32, #tpu.memory_space<vmem>>, %arg6: memref<1x1xf32, #tpu.memory_space<vmem>>) attributes {dimension_semantics = [#tpu.dimension_semantics<parallel>, #tpu.dimension_semantics<arbitrary>], iteration_bounds = array<i64: 2, 2>, scalar_prefetch = 0 : i64, scratch_operands = 1 : i64, tpu.core_type = #tpu.core_type<tc>, window_params = [{transform_indices = @transform_0, window_bounds = array<i64: 32, 32>}, {transform_indices = @transform_1, window_bounds = array<i64: 32, 1>}, {transform_indices = @transform_2, window_bounds = array<i64: 32, 1>}, {transform_indices = @transform_3, window_bounds = array<i64: 1, 8, 128>}]} {
    %c0_i32 = arith.constant 0 : i32
    %0 = arith.cmpi eq, %arg1, %c0_i32 : i32
    %1 = arith.extui %0 : i1 to i32
    %c0_i32_0 = arith.constant 0 : i32
    %2 = arith.cmpi ne, %1, %c0_i32_0 : i32
    scf.if %2 {
      %cst_14 = arith.constant 0.000000e+00 : f32
      %35 = vector.broadcast %cst_14 : f32 to vector<1x1xf32>
      %c0_15 = arith.constant 0 : index
      %c0_16 = arith.constant 0 : index
      %36 = vector.load %arg6[%c0_15, %c0_16] : memref<1x1xf32, #tpu.memory_space<vmem>>, vector<1x1xf32>
      tpu.vector_store %arg6[%c0_15, %c0_16], %35 {strides = array<i32>} : memref<1x1xf32, #tpu.memory_space<vmem>>, vector<1x1xf32>,
    } else {
    }
    %c0 = arith.constant 0 : index
    %c0_1 = arith.constant 0 : index
    %3 = vector.load %arg2[%c0, %c0_1] : memref<32x32xf32, #tpu.memory_space<vmem>>, vector<32x32xf32>
    %c0_2 = arith.constant 0 : index
    %c0_3 = arith.constant 0 : index
    %4 = vector.load %arg3[%c0_2, %c0_3] : memref<32x1xi32, #tpu.memory_space<vmem>>, vector<32x1xi32>
    %c0_4 = arith.constant 0 : index
    %c0_5 = arith.constant 0 : index
    %5 = vector.load %arg4[%c0_4, %c0_5] : memref<32x1xf32, #tpu.memory_space<vmem>>, vector<32x1xf32>
    %6 = tpu.iota {dimensions = array<i32: 1>} : vector<32x32xi32>
    %7 = vector.broadcast %4 : vector<32x1xi32> to vector<32x32xi32>
    %8 = arith.cmpi eq, %6, %7 : vector<32x32xi32>
    %cst = arith.constant 0.000000e+00 : f32
    %9 = vector.broadcast %cst : f32 to vector<32x32xf32>
    %10 = arith.select %8, %3, %9 : vector<32x32xi1>, vector<32x32xf32>
    %cst_6 = arith.constant dense<0.000000e+00> : vector<32xf32>
    %11 = vector.multi_reduction <add>, %10, %cst_6 [1] : vector<32x32xf32> to vector<32xf32>
    %12 = vector.shape_cast %11 : vector<32xf32> to vector<32x1xf32>
    %c2_i32 = arith.constant 2 : i32
    %13 = arith.muli %arg0, %c2_i32 : i32
    %14 = arith.addi %13, %arg1 : i32
    %c32_i32 = arith.constant 32 : i32
    %15 = arith.muli %14, %c32_i32 : i32
    %16 = tpu.iota {dimensions = array<i32: 0>} : vector<32x1xi32>
    %17 = vector.broadcast %15 : i32 to vector<32x1xi32>
    %18 = arith.addi %17, %16 : vector<32x1xi32>
    %c90_i32 = arith.constant 90 : i32
    %19 = vector.broadcast %c90_i32 : i32 to vector<32x1xi32>
    %20 = arith.cmpi slt, %18, %19 : vector<32x1xi32>
    %21 = arith.mulf %12, %5 : vector<32x1xf32>
    %cst_7 = arith.constant 0.000000e+00 : f32
    %22 = vector.broadcast %cst_7 : f32 to vector<32x1xf32>
    %23 = arith.select %20, %21, %22 : vector<32x1xi1>, vector<32x1xf32>
    %c0_8 = arith.constant 0 : index
    %c0_9 = arith.constant 0 : index
    %24 = vector.load %arg6[%c0_8, %c0_9] : memref<1x1xf32, #tpu.memory_space<vmem>>, vector<1x1xf32>
    %25 = vector.shape_cast %23 : vector<32x1xf32> to vector<1x32x1xf32>
    %cst_10 = arith.constant dense<0.000000e+00> : vector<1xf32>
    %26 = vector.multi_reduction <add>, %25, %cst_10 [1, 2] : vector<1x32x1xf32> to vector<1xf32>
    %27 = vector.shape_cast %26 : vector<1xf32> to vector<1x1x1xf32>
    %28 = vector.extract %27[0, 0, 0] : f32 from vector<1x1x1xf32>
    %29 = vector.broadcast %28 : f32 to vector<1x1xf32>
    %30 = arith.addf %24, %29 : vector<1x1xf32>
    %c0_11 = arith.constant 0 : index
    %c0_12 = arith.constant 0 : index
    %31 = vector.load %arg6[%c0_11, %c0_12] : memref<1x1xf32, #tpu.memory_space<vmem>>, vector<1x1xf32>
    tpu.vector_store %arg6[%c0_11, %c0_12], %30 {strides = array<i32>} : memref<1x1xf32, #tpu.memory_space<vmem>>, vector<1x1xf32>,
    %c1_i32 = arith.constant 1 : i32
    %32 = arith.cmpi eq, %arg1, %c1_i32 : i32
    %33 = arith.extui %32 : i1 to i32
    %c0_i32_13 = arith.constant 0 : i32
    %34 = arith.cmpi ne, %33, %c0_i32_13 : i32
    scf.if %34 {
      %c0_14 = arith.constant 0 : index
      %c0_15 = arith.constant 0 : index
      %35 = vector.load %arg6[%c0_14, %c0_15] : memref<1x1xf32, #tpu.memory_space<vmem>>, vector<1x1xf32>
      %36 = vector.shape_cast %35 : vector<1x1xf32> to vector<1x1x1xf32>
      %37 = vector.broadcast %36 : vector<1x1x1xf32> to vector<1x8x128xf32>
      %c0_16 = arith.constant 0 : index
      %c0_17 = arith.constant 0 : index
      %c0_18 = arith.constant 0 : index
      %38 = vector.load %arg5[%c0_16, %c0_17, %c0_18] : memref<1x8x128xf32, #tpu.memory_space<vmem>>, vector<1x8x128xf32>
      tpu.vector_store %arg5[%c0_16, %c0_17, %c0_18], %37 {strides = array<i32>} : memref<1x8x128xf32, #tpu.memory_space<vmem>>, vector<1x8x128xf32>,
    } else {
    }
    return
  }
  func.func @transform_0(%arg0: i32, %arg1: i32) -> (i32, i32) {
    %c2_i32 = arith.constant 2 : i32
    %0 = arith.muli %arg0, %c2_i32 : i32
    %1 = arith.addi %0, %arg1 : i32
    %c2_i32_0 = arith.constant 2 : i32
    %2 = arith.minsi %1, %c2_i32_0 : i32
    %c0_i32 = arith.constant 0 : i32
    %c0_i32_1 = arith.constant 0 : i32
    return %2, %c0_i32 : i32, i32
  }
  func.func @transform_1(%arg0: i32, %arg1: i32) -> (i32, i32) {
    %c2_i32 = arith.constant 2 : i32
    %0 = arith.muli %arg0, %c2_i32 : i32
    %1 = arith.addi %0, %arg1 : i32
    %c2_i32_0 = arith.constant 2 : i32
    %2 = arith.minsi %1, %c2_i32_0 : i32
    %c0_i32 = arith.constant 0 : i32
    %c0_i32_1 = arith.constant 0 : i32
    return %2, %c0_i32 : i32, i32
  }
  func.func @transform_2(%arg0: i32, %arg1: i32) -> (i32, i32) {
    %c2_i32 = arith.constant 2 : i32
    %0 = arith.muli %arg0, %c2_i32 : i32
    %1 = arith.addi %0, %arg1 : i32
    %c2_i32_0 = arith.constant 2 : i32
    %2 = arith.minsi %1, %c2_i32_0 : i32
    %c0_i32 = arith.constant 0 : i32
    %c0_i32_1 = arith.constant 0 : i32
    return %2, %c0_i32 : i32, i32
  }
  func.func @transform_3(%arg0: i32, %arg1: i32) -> (i32, i32, i32) {
    %c0_i32 = arith.constant 0 : i32
    %c0_i32_0 = arith.constant 0 : i32
    %c0_i32_1 = arith.constant 0 : i32
    return %arg0, %c0_i32, %c0_i32_0 : i32, i32, i32
  }
}

</mosaic_0001>

<llo_original>
// kernel: tpu_custom_call.1
$region0: #{tpu_custom_call.1}
  #allocation0 [shape = 'u32[]', space=smem, size = 0x4, offset = 0x4, fixed_abs, tag = 'smem constant byte address 0x4 - core index']
  #allocation1 [shape = 'u32[144,128]{1,0:T(1,128)}', space=vmem, size = 0x12000, scoped, tag = 'internal scratch']
  #allocation2 [shape = 'f32[1,1]{1,0:T(1,128)}', space=vmem, size = 0x200, scoped, tag = 'scratch operand']
  %s0 = inlined_call_operand.vmem [shape: f32[90,32], index: 0, kind: input, shape index: {}]
  %s1 = inlined_call_operand.vmem [shape: s32[90,1], index: 1, kind: input, shape index: {}]
  %s2 = inlined_call_operand.vmem [shape: f32[90,1], index: 2, kind: input, shape index: {}]
  %s3 = inlined_call_operand.hbm [shape: f32[2,8,128], index: 3, kind: output, shape index: {}]
  %s4 = sld [smem:[#allocation0]]
  $region53: #{tpu_custom_call.1} parent=0
    _
  %s6 = ssub.s32 1, %s4
  %s7 = scalar_select 0, %s6, %s4
  $region1: #{tpu_custom_call.1} parent=0
    #allocation3 [shape = 'u8[8192]{0}', space=vmem, size = 0x2000, scoped, tag = 'output window, operand 0']
    #allocation4 [shape = 's32[2]{0}', space=sflag, size = 0x8, scoped, tag = 'scoped memory for tpu_custom_call.1']
    %8 = vsyncpa [#allocation4], 0
    %s9 = scalar_lea.sflag [#allocation4], 1
    %10 = vsyncpa %s9, 0
    loop: start=0, step=1, limit=6
    $region2: #{tpu_custom_call.1} parent=1 // loop_pre_header
      _
    $region3: #{tpu_custom_call.1} parent=1 // loop_header
      %s12 = sphi 0, %s16
      %p13 = scmp.ge.s32.totalorder %s12, 6
      %s19 = sphi 0, %s31
      %s20 = sphi 0, %s27
      %s21 = sphi 0, %s19
      %s22 = sphi 0, %s20
      %s23 = sphi 0, %s21
      %s24 = sphi 0, %s22
      %s42 = sphi 0, %s44
      %s45 = sphi 0, %s42
      %s46 = sphi 0, %s45
      %s62 = sphi 0, %s46
      %s76 = sphi 0, %s78
      %s79 = sphi 0, %s76
      %s80 = sphi 0, %s79
      %s96 = sphi 0, %s80
      %s110 = sphi 0, %s112
      %s113 = sphi 0, %s110
      %s114 = sphi 0, %s113
      %s130 = sphi 0, %s114
      %s136 = sphi 0, %s138
      %s139 = sphi 0, %s136
      %s140 = sphi 0, %s139
      %s156 = sphi 0, %s140
    $region4: #{tpu_custom_call.1} parent=1 // loop_header_branch
      %15 = sbr.rel (%p13) target = $region8
    $region5: #{tpu_custom_call.1} parent=1 // loop_body
      %s17 = ssub.s32 %s12, 1
      %s18 = ssub.s32 %s12, 2
      %s25 = sadd.s32 1, %s20
      %p26 = scmp.ge.s32.totalorder %s25, 2
      %s27 = scalar_select %p26, 0, %s25
      %s28 = sadd.s32 1, %s19
      %s29 = scalar_select %p26, %s28, %s19
      %p30 = scmp.ge.s32.totalorder %s29, 2
      %s31 = scalar_select %p30, 0, %s29
      %s32 = smul.u32 %s19, 2
      %s33 = sadd.s32 %s32, %s20
      %p34 = scmp.lt.s32.totalorder %s33, 2
      %s35 = scalar_select %p34, %s33, 2
      %s36 = smul.u32 %s31, 2
      %s37 = sadd.s32 %s36, %s27
      %p38 = scmp.lt.s32.totalorder %s37, 2
      %s39 = scalar_select %p38, %s37, 2
      %s40 = ssub.s32 %s35, %s39
      %p41 = scmp.eq.s32.totalorder %s40, 0
      %s43 = sadd.s32 %s42, 1
      %s44 = scalar_select %p41, %s42, %s43
      %p47 = pneg %p41
      %p48 = scmp.eq.s32.totalorder %s12, 3
      %p49 = por %p47, %p48
      %p50 = scmp.ne.s32.totalorder %s42, %s45
      %p51 = scmp.eq.s32.totalorder %s12, 0
      %p52 = por %p50, %p51
      %p53 = scmp.ne.s32.totalorder %s42, %s45
      %p54 = scmp.eq.s32.totalorder %s17, 3
      %p55 = por %p53, %p54
      %p56 = scmp.ne.s32.totalorder %s45, %s46
      %p57 = scmp.eq.s32.totalorder %s17, 0
      %p58 = por %p56, %p57
      %p59 = scmp.ne.s32.totalorder %s45, %s46
      %p60 = scmp.eq.s32.totalorder %s18, 3
      %p61 = por %p59, %p60
      %p63 = scmp.ne.s32.totalorder %s46, %s62
      %p64 = scmp.eq.s32.totalorder %s18, 0
      %p65 = por %p63, %p64
      %s66 = smul.u32 %s19, 2
      %s67 = sadd.s32 %s66, %s20
      %p68 = scmp.lt.s32.totalorder %s67, 2
      %s69 = scalar_select %p68, %s67, 2
      %s70 = smul.u32 %s31, 2
      %s71 = sadd.s32 %s70, %s27
      %p72 = scmp.lt.s32.totalorder %s71, 2
      %s73 = scalar_select %p72, %s71, 2
      %s74 = ssub.s32 %s69, %s73
      %p75 = scmp.eq.s32.totalorder %s74, 0
      %s77 = sadd.s32 %s76, 1
      %s78 = scalar_select %p75, %s76, %s77
      %p81 = pneg %p75
      %p82 = scmp.eq.s32.totalorder %s12, 3
      %p83 = por %p81, %p82
      %p84 = scmp.ne.s32.totalorder %s76, %s79
      %p85 = scmp.eq.s32.totalorder %s12, 0
      %p86 = por %p84, %p85
      %p87 = scmp.ne.s32.totalorder %s76, %s79
      %p88 = scmp.eq.s32.totalorder %s17, 3
      %p89 = por %p87, %p88
      %p90 = scmp.ne.s32.totalorder %s79, %s80
      %p91 = scmp.eq.s32.totalorder %s17, 0
      %p92 = por %p90, %p91
      %p93 = scmp.ne.s32.totalorder %s79, %s80
      %p94 = scmp.eq.s32.totalorder %s18, 3
      %p95 = por %p93, %p94
      %p97 = scmp.ne.s32.totalorder %s80, %s96
      %p98 = scmp.eq.s32.totalorder %s18, 0
      %p99 = por %p97, %p98
      %s100 = smul.u32 %s19, 2
      %s101 = sadd.s32 %s100, %s20
      %p102 = scmp.lt.s32.totalorder %s101, 2
      %s103 = scalar_select %p102, %s101, 2
      %s104 = smul.u32 %s31, 2
      %s105 = sadd.s32 %s104, %s27
      %p106 = scmp.lt.s32.totalorder %s105, 2
      %s107 = scalar_select %p106, %s105, 2
      %s108 = ssub.s32 %s103, %s107
      %p109 = scmp.eq.s32.totalorder %s108, 0
      %s111 = sadd.s32 %s110, 1
      %s112 = scalar_select %p109, %s110, %s111
      %p115 = pneg %p109
      %p116 = scmp.eq.s32.totalorder %s12, 3
      %p117 = por %p115, %p116
      %p118 = scmp.ne.s32.totalorder %s110, %s113
      %p119 = scmp.eq.s32.totalorder %s12, 0
      %p120 = por %p118, %p119
      %p121 = scmp.ne.s32.totalorder %s110, %s113
      %p122 = scmp.eq.s32.totalorder %s17, 3
      %p123 = por %p121, %p122
      %p124 = scmp.ne.s32.totalorder %s113, %s114
      %p125 = scmp.eq.s32.totalorder %s17, 0
      %p126 = por %p124, %p125
      %p127 = scmp.ne.s32.totalorder %s113, %s114
      %p128 = scmp.eq.s32.totalorder %s18, 3
      %p129 = por %p127, %p128
      %p131 = scmp.ne.s32.totalorder %s114, %s130
      %p132 = scmp.eq.s32.totalorder %s18, 0
      %p133 = por %p131, %p132
      %s134 = ssub.s32 %s19, %s31
      %p135 = scmp.eq.s32.totalorder %s134, 0
      %s137 = sadd.s32 %s136, 1
      %s138 = scalar_select %p135, %s136, %s137
      %p141 = pneg %p135
      %p142 = scmp.eq.s32.totalorder %s12, 3
      %p143 = por %p141, %p142
      %p144 = scmp.ne.s32.totalorder %s136, %s139
      %p145 = scmp.eq.s32.totalorder %s12, 0
      %p146 = por %p144, %p145
      %p147 = scmp.ne.s32.totalorder %s136, %s139
      %p148 = scmp.eq.s32.totalorder %s17, 3
      %p149 = por %p147, %p148
      %p150 = scmp.ne.s32.totalorder %s139, %s140
      %p151 = scmp.eq.s32.totalorder %s17, 0
      %p152 = por %p150, %p151
      %p153 = scmp.ne.s32.totalorder %s139, %s140
      %p154 = scmp.eq.s32.totalorder %s18, 3
      %p155 = por %p153, %p154
      %p157 = scmp.ne.s32.totalorder %s140, %s156
      %p158 = scmp.eq.s32.totalorder %s18, 0
      %p159 = por %p157, %p158
      %p160 = scmp.le.s32.totalorder 1, %s12
      %p161 = scmp.lt.s32.totalorder %s12, 5
      %p162 = pnand %p160, %p161
      %p163 = pneg %p162
      // Predicated region
      $region9: #{tpu_custom_call.1} parent=5 // pred_check
        _
      $region10: #{tpu_custom_call.1} parent=5 // pred_check_branch
        %165 = sbr.rel (%p162) target = $region12
      $region11: #{tpu_custom_call.1} parent=5 // pred_region
        %s166 = ssub.s32 %s12, 1
      $region12: #{tpu_custom_call.1} parent=5 // pred_fallthru
        _
      %p167 = scmp.lt.s32.totalorder %s12, 4
      // Predicated region
      $region13: #{tpu_custom_call.1} parent=5 // pred_check
        %p168 = pneg %p167
      $region14: #{tpu_custom_call.1} parent=5 // pred_check_branch
        %170 = sbr.rel (%p168) target = $region16
      $region15: #{tpu_custom_call.1} parent=5 // pred_region
        // Predicated region
        $region17: #{tpu_custom_call.1} parent=15 // pred_check
          %p171 = pneg %p52
        $region18: #{tpu_custom_call.1} parent=15 // pred_check_branch
          %173 = sbr.rel (%p171) target = $region20
        $region19: #{tpu_custom_call.1} parent=15 // pred_region
          %s174 = smul.u32 %s19, 2
          %s175 = sadd.s32 %s174, %s20
          %p176 = scmp.lt.s32.totalorder %s175, 2
          %s177 = scalar_select %p176, %s175, 2
          %s178 = smul.u32 4, %s177
          %p179 = scmp.lt.s32.totalorder %s178, 11
          %s180 = scalar_select %p179, %s178, 11
          %s181 = smul.addr %s180, 8
          %s182 = scalar_lea.vmem %s0, %s181
          %s183 = smul.u32 %s19, 2
          %s184 = sadd.s32 %s183, %s20
          %p185 = scmp.lt.s32.totalorder %s184, 2
          %s186 = scalar_select %p185, %s184, 2
          %s187 = smul.u32 4, %s186
        $region20: #{tpu_custom_call.1} parent=15 // pred_fallthru
          _
        // Predicated region
        $region21: #{tpu_custom_call.1} parent=15 // pred_check
          %p188 = pneg %p86
        $region22: #{tpu_custom_call.1} parent=15 // pred_check_branch
          %190 = sbr.rel (%p188) target = $region24
        $region23: #{tpu_custom_call.1} parent=15 // pred_region
          %s191 = smul.u32 %s19, 2
          %s192 = sadd.s32 %s191, %s20
          %p193 = scmp.lt.s32.totalorder %s192, 2
          %s194 = scalar_select %p193, %s192, 2
          %s195 = smul.u32 4, %s194
          %p196 = scmp.lt.s32.totalorder %s195, 11
          %s197 = scalar_select %p196, %s195, 11
          %s198 = smul.addr %s197, 8
          %s199 = scalar_lea.vmem %s1, %s198
          %s200 = smul.u32 %s19, 2
          %s201 = sadd.s32 %s200, %s20
          %p202 = scmp.lt.s32.totalorder %s201, 2
          %s203 = scalar_select %p202, %s201, 2
          %s204 = smul.u32 4, %s203
        $region24: #{tpu_custom_call.1} parent=15 // pred_fallthru
          _
        // Predicated region
        $region25: #{tpu_custom_call.1} parent=15 // pred_check
          %p205 = pneg %p120
        $region26: #{tpu_custom_call.1} parent=15 // pred_check_branch
          %207 = sbr.rel (%p205) target = $region28
        $region27: #{tpu_custom_call.1} parent=15 // pred_region
          %s208 = smul.u32 %s19, 2
          %s209 = sadd.s32 %s208, %s20
          %p210 = scmp.lt.s32.totalorder %s209, 2
          %s211 = scalar_select %p210, %s209, 2
          %s212 = smul.u32 4, %s211
          %p213 = scmp.lt.s32.totalorder %s212, 11
          %s214 = scalar_select %p213, %s212, 11
          %s215 = smul.addr %s214, 8
          %s216 = scalar_lea.vmem %s2, %s215
          %s217 = smul.u32 %s19, 2
          %s218 = sadd.s32 %s217, %s20
          %p219 = scmp.lt.s32.totalorder %s218, 2
          %s220 = scalar_select %p219, %s218, 2
          %s221 = smul.u32 4, %s220
        $region28: #{tpu_custom_call.1} parent=15 // pred_fallthru
          _
      $region16: #{tpu_custom_call.1} parent=5 // pred_fallthru
        _
      %p222 = scmp.le.s32.totalorder 1, %s12
      %p223 = scmp.lt.s32.totalorder %s12, 5
      %p224 = pnand %p222, %p223
      %p225 = pneg %p224
      // Predicated region
      $region29: #{tpu_custom_call.1} parent=5 // pred_check
        _
      $region30: #{tpu_custom_call.1} parent=5 // pred_check_branch
        %227 = sbr.rel (%p224) target = $region32
      $region31: #{tpu_custom_call.1} parent=5 // pred_region
        %s228 = ssub.s32 %s12, 1
        %s229 = smul.u32 %s21, 2
        %s230 = sadd.s32 %s229, %s22
        %p231 = scmp.lt.s32.totalorder %s230, 2
        %s232 = scalar_select %p231, %s230, 2
        %s233 = smul.u32 4, %s232
        %p234 = scmp.lt.s32.totalorder %s233, 11
        %s235 = scalar_select %p234, %s233, 11
        %s236 = smul.addr %s235, 8
        %s237 = scalar_lea.vmem %s0, %s236
        %p238 = pneg %p58
        %p239 = pneg %p55
        %s240 = smul.u32 %s21, 2
        %s241 = sadd.s32 %s240, %s22
        %p242 = scmp.lt.s32.totalorder %s241, 2
        %s243 = scalar_select %p242, %s241, 2
        %s244 = smul.u32 4, %s243
        %p245 = scmp.lt.s32.totalorder %s244, 11
        %s246 = scalar_select %p245, %s244, 11
        %s247 = smul.addr %s246, 8
        %s248 = scalar_lea.vmem %s1, %s247
        %p249 = pneg %p92
        %p250 = pneg %p89
        %s251 = smul.u32 %s21, 2
        %s252 = sadd.s32 %s251, %s22
        %p253 = scmp.lt.s32.totalorder %s252, 2
        %s254 = scalar_select %p253, %s252, 2
        %s255 = smul.u32 4, %s254
        %p256 = scmp.lt.s32.totalorder %s255, 11
        %s257 = scalar_select %p256, %s255, 11
        %s258 = smul.addr %s257, 8
        %s259 = scalar_lea.vmem %s2, %s258
        %p260 = pneg %p126
        %p261 = pneg %p123
        %p262 = pneg %p152
        %p263 = pneg %p149
        %s264 = sand.u32 %s139, 1
        %s265 = scalar_lea.sflag [#allocation4], %s264
        %s266 = sand.u32 %s139, 1
        %s267 = smul.addr %s266, 8
        %s268 = scalar_lea.vmem [#allocation3], %s267
        %s269 = smul.u32 %s21, 2
        %s270 = sadd.s32 %s269, %s22
        %p271 = scmp.lt.s32.totalorder %s270, 2
        %s272 = scalar_select %p271, %s270, 2
        %s273 = smul.u32 4, %s272
        %p274 = scmp.lt.s32.totalorder %s273, 11
        %s275 = scalar_select %p274, %s273, 11
        %s276 = smul.addr %s275, 8
        %s277 = scalar_lea.vmem %s0, %s276
        %s278 = smul.u32 %s21, 2
        %s279 = sadd.s32 %s278, %s22
        %p280 = scmp.lt.s32.totalorder %s279, 2
        %s281 = scalar_select %p280, %s279, 2
        %s282 = smul.u32 4, %s281
        %s283 = smul.u32 %s21, 2
        %s284 = sadd.s32 %s283, %s22
        %p285 = scmp.lt.s32.totalorder %s284, 2
        %s286 = scalar_select %p285, %s284, 2
        %s287 = smul.u32 4, %s286
        %p288 = scmp.lt.s32.totalorder %s287, 11
        %s289 = scalar_select %p288, %s287, 11
        %s290 = smul.addr %s289, 8
        %s291 = scalar_lea.vmem %s1, %s290
        %s292 = smul.u32 %s21, 2
        %s293 = sadd.s32 %s292, %s22
        %p294 = scmp.lt.s32.totalorder %s293, 2
        %s295 = scalar_select %p294, %s293, 2
        %s296 = smul.u32 4, %s295
        %s297 = smul.u32 %s21, 2
        %s298 = sadd.s32 %s297, %s22
        %p299 = scmp.lt.s32.totalorder %s298, 2
        %s300 = scalar_select %p299, %s298, 2
        %s301 = smul.u32 4, %s300
        %p302 = scmp.lt.s32.totalorder %s301, 11
        %s303 = scalar_select %p302, %s301, 11
        %s304 = smul.addr %s303, 8
        %s305 = scalar_lea.vmem %s2, %s304
        %s306 = smul.u32 %s21, 2
        %s307 = sadd.s32 %s306, %s22
        %p308 = scmp.lt.s32.totalorder %s307, 2
        %s309 = scalar_select %p308, %s307, 2
        %s310 = smul.u32 4, %s309
        %p311 = scmp.eq.s32.totalorder %s22, 0
        // Predicated region
        $region33: #{tpu_custom_call.1} parent=31 // pred_check
          %p312 = pneg %p311
        $region34: #{tpu_custom_call.1} parent=31 // pred_check_branch
          %314 = sbr.rel (%p312) target = $region36
        $region35: #{tpu_custom_call.1} parent=31 // pred_region
          %vm315 = vcmask 0
          %316 = vst.msk [vmem:[#allocation2] sm:$0x1] %vm315, 0.0
        $region36: #{tpu_custom_call.1} parent=31 // pred_fallthru
          _
        %v317 = vld [vmem:[%s277] sm:$0xff]
        %v318 = vld [vmem:[%s277 + $0x8] sm:$0xff]
        %v319 = vld [vmem:[%s277 + $0x10] sm:$0xff]
        %v320 = vld [vmem:[%s277 + $0x18] sm:$0xff]
        %v321 = vld [vmem:[%s291] sm:$0xff]
        %v322 = vld [vmem:[%s291 + $0x8] sm:$0xff]
        %v323 = vld [vmem:[%s291 + $0x10] sm:$0xff]
        %v324 = vld [vmem:[%s291 + $0x18] sm:$0xff]
        %v325 = vld [vmem:[%s305] sm:$0xff]
        %v326 = vld [vmem:[%s305 + $0x8] sm:$0xff]
        %v327 = vld [vmem:[%s305 + $0x10] sm:$0xff]
        %v328 = vld [vmem:[%s305 + $0x18] sm:$0xff]
        %v329 = vlaneseq
        %v330 = vand.u32 %v329, 127
        %331 = vset.pattern.permute.xlu0 0
        %332 = vperm.xlu0 %331, %v321
        %v333 = vpop.permute.xlu0 %332
        %334 = vset.pattern.permute.xlu0 0
        %335 = vperm.xlu0 %334, %v322
        %v336 = vpop.permute.xlu0 %335
        %337 = vset.pattern.permute.xlu0 0
        %338 = vperm.xlu0 %337, %v323
        %v339 = vpop.permute.xlu0 %338
        %340 = vset.pattern.permute.xlu0 0
        %341 = vperm.xlu0 %340, %v324
        %v342 = vpop.permute.xlu0 %341
        %vm343 = vcmp.eq.s32.totalorder %v330, %v333
        %vm344 = vcmp.eq.s32.totalorder %v330, %v336
        %vm345 = vcmp.eq.s32.totalorder %v330, %v339
        %vm346 = vcmp.eq.s32.totalorder %v330, %v342
        %v347 = vsel %vm343, %v317, 0.0
        %v348 = vsel %vm344, %v318, 0.0
        %v349 = vsel %vm345, %v319, 0.0
        %v350 = vsel %vm346, %v320, 0.0
        %vm351 = vcmask 261120
        %v352 = vsel %vm351, %v347, 0.0
        %353 = vadd.xlane.f32.xlu0 %v352
        %v354 = vpop.xlane.xlu0 %353
        %v355 = vsel %vm351, %v348, 0.0
        %356 = vadd.xlane.f32.xlu0 %v355
        %v357 = vpop.xlane.xlu0 %356
        %v358 = vsel %vm351, %v349, 0.0
        %359 = vadd.xlane.f32.xlu0 %v358
        %v360 = vpop.xlane.xlu0 %359
        %v361 = vsel %vm351, %v350, 0.0
        %362 = vadd.xlane.f32.xlu0 %v361
        %v363 = vpop.xlane.xlu0 %362
        %s364 = smul.u32 %s21, 2
        %s365 = sadd.s32 %s364, %s22
        %s366 = smul.u32 %s365, 32
        %v367 = vlaneseq
        %v368 = vshrl.u32 %v367, 7
        %v369 = vadd.s32 %v368, 8
        %v370 = vadd.s32 %v368, 16
        %v371 = vadd.s32 %v368, 24
        %v372 = vstv %s366
        %v373 = vadd.s32 %v372, %v368
        %v374 = vadd.s32 %v372, %v369
        %v375 = vadd.s32 %v372, %v370
        %v376 = vadd.s32 %v372, %v371
        %vm377 = vcmp.lt.s32.totalorder %v373, 90
        %vm378 = vcmp.lt.s32.totalorder %v374, 90
        %vm379 = vcmp.lt.s32.totalorder %v375, 90
        %vm380 = vcmp.lt.s32.totalorder %v376, 90
        %v381 = vmul.f32 %v354, %v325
        %v382 = vmul.f32 %v357, %v326
        %v383 = vmul.f32 %v360, %v327
        %v384 = vmul.f32 %v363, %v328
        %v385 = vsel %vm377, %v381, 0.0
        %v386 = vsel %vm378, %v382, 0.0
        %v387 = vsel %vm379, %v383, 0.0
        %v388 = vsel %vm380, %v384, 0.0
        %v389 = vld [vmem:[#allocation2] sm:$0x1]
        %vm390 = vcmask 7168
        %v391 = vsel %vm390, %v385, 0.0
        %v392 = vsel %vm390, %v386, 0.0
        %v393 = vadd.f32 %v391, %v392
        %v394 = vsel %vm390, %v387, 0.0
        %v395 = vadd.f32 %v393, %v394
        %v396 = vsel %vm390, %v388, 0.0
        %v397 = vadd.f32 %v395, %v396
        %398 = vadd.xlane.f32.xlu0 %v397
        %v399 = vpop.xlane.xlu0 %398
        %v400 = vrot.slane %v399, 4
        %v401 = vadd.f32 %v399, %v400
        %v402 = vrot.slane %v401, 2
        %v403 = vadd.f32 %v401, %v402
        %v404 = vrot.slane %v403, 1
        %v405 = vadd.f32 %v403, %v404
        %s406 = vtos %v405
        %v407 = vstv %s406
        %v408 = vadd.f32 %v389, %v407
        %vm409 = vcmask 0
        %410 = vst.msk [vmem:[#allocation2] sm:$0x1] %vm409, %v408
        %p411 = scmp.eq.s32.totalorder %s22, 1
        // Predicated region
        $region37: #{tpu_custom_call.1} parent=31 // pred_check
          %p412 = pneg %p411
        $region38: #{tpu_custom_call.1} parent=31 // pred_check_branch
          %414 = sbr.rel (%p412) target = $region40
        $region39: #{tpu_custom_call.1} parent=31 // pred_region
          %v415 = vld [vmem:[#allocation2] sm:$0x1]
          %v417 = vlaneseq
          %v418 = vshrl.u32 %v417, 7
          %v419 = vsub.s32 0, %v418
          %v420 = vrot.slane %v415, %v419
          %421 = vset.pattern.permute.xlu0 0
          %422 = vperm.xlu0 %421, %v420
          %v423 = vpop.permute.xlu0 %422
          %425 = vst [vmem:[%s268] sm:$0xff] %v423
        $region40: #{tpu_custom_call.1} parent=31 // pred_fallthru
          _
        %s426 = sand.u32 %s139, 1
        %s427 = scalar_lea.sflag [#allocation4], %s426
        %s428 = sand.u32 %s139, 1
        %s429 = smul.addr %s428, 8
        %s430 = scalar_lea.vmem [#allocation3], %s429
        // Predicated region
        $region41: #{tpu_custom_call.1} parent=31 // pred_check
          %p431 = pneg %p149
        $region42: #{tpu_custom_call.1} parent=31 // pred_check_branch
          %433 = sbr.rel (%p431) target = $region44
        $region43: #{tpu_custom_call.1} parent=31 // pred_region
          %s435 = ssub.s32 128, 128
          %436 = vsyncadd %s427, %s435
          %s437 = smul.addr %s21, 128
          %s438 = scalar_lea.hbm %s3, %s437
          %s440 = sshll.u32 %s430, 4
          %s441 = int_to_ptr.vmem [resolvable:$true] %s440
          %443 = dma.vmem_to_hbm [thread:$0]  %s441, 128, %s438, %s427
        $region44: #{tpu_custom_call.1} parent=31 // pred_fallthru
          _
      $region32: #{tpu_custom_call.1} parent=5 // pred_fallthru
        _
      %p444 = scmp.le.s32.totalorder 2, %s12
      // Predicated region
      $region45: #{tpu_custom_call.1} parent=5 // pred_check
        %p445 = pneg %p444
      $region46: #{tpu_custom_call.1} parent=5 // pred_check_branch
        %447 = sbr.rel (%p445) target = $region48
      $region47: #{tpu_custom_call.1} parent=5 // pred_region
        %s448 = ssub.s32 %s12, 2
        // Predicated region
        $region49: #{tpu_custom_call.1} parent=47 // pred_check
          %p449 = pneg %p155
        $region50: #{tpu_custom_call.1} parent=47 // pred_check_branch
          %451 = sbr.rel (%p449) target = $region52
        $region51: #{tpu_custom_call.1} parent=47 // pred_region
          %s452 = sand.u32 %s140, 1
          %s453 = scalar_lea.sflag [#allocation4], %s452
          %s454 = sand.u32 %s140, 1
          %s455 = smul.addr %s454, 8
          %s456 = scalar_lea.vmem [#allocation3], %s455
          %457 = dma.done %s453, 128
        $region52: #{tpu_custom_call.1} parent=47 // pred_fallthru
          _
      $region48: #{tpu_custom_call.1} parent=5 // pred_fallthru
        _
    $region6: #{tpu_custom_call.1} parent=1 // loop_footer
      %s16 = sadd.s32 1, %s12
    $region7: #{tpu_custom_call.1} parent=1 // loop_footer_branch
      %11 = sbr.rel target = $region3
    $region8: #{tpu_custom_call.1} parent=1 // loop_exit
      _
    %458 = vsyncpa [#allocation4], 1
    %s459 = scalar_lea.sflag [#allocation4], 1
    %460 = vsyncpa %s459, 1

</llo_original>
